<compile_context>
chip_gen: v6e
topology: v6e:2x2x1
jax: 0.10.0
libtpu: 0.0.40
codegen_flags: <defaults>
</compile_context>

<pallas_src>
import functools

import jax
import jax.numpy as jnp
from jax.experimental import pallas as pl
from jax.experimental.pallas import tpu as pltpu

LANE = 128
SUB = 8

# Safe on every generation (>= default scoped limit on v5e/v6e/v7x, and well
# under v7x's 64 MiB physical VMEM).  Raise to ~96 MiB on v5e/v6e for very
# large feature widths.
DEFAULT_VMEM_LIMIT = 48 * 1024 * 1024


def _round_up(x, m):
    return (x + m - 1) // m * m


def prepare_params(params, compute_dtype=jnp.float32):
    """One-time parameter preparation (do NOT call per forward).

    * Zero-pads every feature dim to a multiple of 128 (lane-dense blocks;
      zero padding is mathematically exact through the whole layer chain).
    * Pre-transposes weights from PyTorch (out, in) to (in, out) so the kernel
      uses the MXU-native LHS-dim-1 x RHS-dim-0 contraction.
    * Optionally stores weights in bf16 (MXU-native, halves weight VMEM/DMA)
      while biases and accumulation stay f32.

    Returns (flat_params, n_in, n_out_final).
    """
    n_in = params[0][0].shape[1]
    dims = [n_in] + [w.shape[0] for (w, _) in params]
    pdims = [_round_up(d, LANE) for d in dims]

    flat = []
    for l, (w, b) in enumerate(params):
        o, i = w.shape
        w_t = jnp.asarray(w, compute_dtype).T  # (in, out)
        w_p = jnp.zeros((pdims[l], pdims[l + 1]), compute_dtype).at[:i, :o].set(w_t)
        b_p = jnp.zeros((1, pdims[l + 1]), jnp.float32).at[0, :o].set(
            jnp.asarray(b, jnp.float32))
        flat.extend([w_p, b_p])
    return tuple(flat), n_in, dims[-1]


def _make_fused_kernel(n_layers):
    """Kernel computing n_layers chained Linear layers on one batch tile.

    All intermediate activations live in VMEM/vregs; weights are already in
    (in, out) layout so each layer is a plain h @ w (+ bias, f32)."""

    def kernel(x_ref, *refs):
        # refs = (w0, b0, w1, b1, ..., w_{L-1}, b_{L-1}, o_ref)
        o_ref = refs[-1]
        h = x_ref[...]                                   # (TB, d0_pad) f32
        for l in range(n_layers):
            w = refs[2 * l][...]                         # (d_l_pad, d_{l+1}_pad)
            b = refs[2 * l + 1][...]                     # (1, d_{l+1}_pad) f32
            h = jnp.dot(h.astype(w.dtype), w,
                        preferred_element_type=jnp.float32) + b
        o_ref[...] = h.astype(o_ref.dtype)

    return kernel


@functools.partial(
    jax.jit,
    static_argnames=("n_out", "tb", "vmem_limit_bytes", "single_buffer_weights"))
def _forward(x, flat_params, *, n_out, tb, vmem_limit_bytes, single_buffer_weights):
    B, n_in = x.shape
    n_layers = len(flat_params) // 2
    # Padded feature widths, recovered from the prepared (in, out) weights.
    pdims = [flat_params[0].shape[0]] + [flat_params[2 * l].shape[1]
                                         for l in range(n_layers)]
    w_itemsize = flat_params[0].dtype.itemsize

    # Grid-invariant weights/biases: single-buffered when supported.
    w_bufs = 1 if single_buffer_weights else 2
    weight_bytes = w_bufs * sum(
        pdims[l] * pdims[l + 1] * w_itemsize + pdims[l + 1] * 4
        for l in range(n_layers))

    # ---- batch tile selection --------------------------------------------
    Bp = _round_up(max(B, SUB), SUB)
    TB = _round_up(min(tb, Bp), SUB)
    # v7x megacore: ensure >= 2 parallel grid steps whenever the batch allows.
    if Bp // TB < 2 and Bp >= 2 * SUB:
        TB = _round_up((Bp + 1) // 2, SUB)

    # Keep double-buffered x/out tiles + weights under the scoped-VMEM budget.
    budget = int(vmem_limit_bytes * 0.85)

    def vmem_needed(t):
        return 2 * t * (pdims[0] + pdims[-1]) * 4 + weight_bytes

    while TB > SUB and vmem_needed(TB) > budget:
        TB = max(SUB, _round_up(TB // 2, SUB))
    # TODO(synk): if weight_bytes alone exceeds `budget`, switch to the K/N
    # tiled accumulator path described at the top of this file.
    Bp = _round_up(Bp, TB)

    # ---- pad the input (only per-call padding left) ------------------------
    x_p = x
    if (Bp, pdims[0]) != (B, n_in):
        x_p = jnp.zeros((Bp, pdims[0]), x.dtype).at[:B, :n_in].set(x)

    # ---- block specs --------------------------------------------------------
    in_specs = [pl.BlockSpec((TB, pdims[0]), lambda i: (i, 0))]
    for l in range(n_layers):
        if single_buffer_weights:
            in_specs.append(pl.BlockSpec((pdims[l], pdims[l + 1]),
                                         lambda i: (0, 0),
                                         pipeline_mode=pl.Buffered(1)))
            in_specs.append(pl.BlockSpec((1, pdims[l + 1]),
                                         lambda i: (0, 0),
                                         pipeline_mode=pl.Buffered(1)))
        else:
            in_specs.append(pl.BlockSpec((pdims[l], pdims[l + 1]),
                                         lambda i: (0, 0)))
            in_specs.append(pl.BlockSpec((1, pdims[l + 1]),
                                         lambda i: (0, 0)))

    out_p = pl.pallas_call(
        _make_fused_kernel(n_layers),
        out_shape=jax.ShapeDtypeStruct((Bp, pdims[-1]), x.dtype),
        grid=(Bp // TB,),
        in_specs=in_specs,
        out_specs=pl.BlockSpec((TB, pdims[-1]), lambda i: (i, 0)),
        compiler_params=pltpu.CompilerParams(
            dimension_semantics=("parallel",),
            vmem_limit_bytes=vmem_limit_bytes,
        ),
    )(x_p, *flat_params)

    return out_p[:B, :n_out]


def simple_linear_model(x, prepared, *, tb=512,
                        vmem_limit_bytes=DEFAULT_VMEM_LIMIT):
    """Forward pass of SimpleLinearModel on pre-prepared params.

    x:        (B, n_in) float32
    prepared: output of prepare_params(params)
    """
    flat_params, _, n_out = prepared
    try:
        return _forward(x, flat_params, n_out=n_out, tb=tb,
                        vmem_limit_bytes=vmem_limit_bytes,
                        single_buffer_weights=True)
    except Exception:
        # Fallback for JAX versions where pipeline_mode=pl.Buffered(1) on a
        # pallas_call BlockSpec is not supported; identical math, default
        # double-buffered weights.
        return _forward(x, flat_params, n_out=n_out, tb=tb,
                        vmem_limit_bytes=vmem_limit_bytes,
                        single_buffer_weights=False)


def init_params(key, n_in, n_out, n_layers):
    """nn.Linear-shaped params: weight (n_out, fan_in), bias (n_out,),
    uniform(-1/sqrt(fan_in), 1/sqrt(fan_in))."""
    params = []
    for i in range(n_layers):
        fan_in = n_in if i == 0 else n_out
        key, kw, kb = jax.random.split(key, 3)
        bound = 1.0 / jnp.sqrt(fan_in)
        w = jax.random.uniform(kw, (n_out, fan_in), jnp.float32, -bound, bound)
        b = jax.random.uniform(kb, (n_out,), jnp.float32, -bound, bound)
        params.append((w, b))
    return params


if __name__ == "__main__":
    key = jax.random.PRNGKey(0)

    batch, n_in, n_out, n_layers = 8, 32, 32, 3

    kx, kp = jax.random.split(key)
    x = jax.random.normal(kx, (batch, n_in), jnp.float32)
    params = init_params(kp, n_in, n_out, n_layers)

    # One-time parameter prep (padding + pre-transpose), hoisted out of the
    # forward path.  Use compute_dtype=jnp.bfloat16 on v6e/v7x if the model's
    # accuracy budget allows.
    prepared = jax.block_until_ready(prepare_params(params, jnp.float32))

    out = simple_linear_model(x, prepared)
    out = jax.block_until_ready(out)

    # Reference in plain JAX (same math as PyTorch: x @ W^T + b per layer).
    ref = x
    for (w, b) in params:
        ref = ref @ w.T + b

    assert out.shape == (batch, n_out)
    assert jnp.allclose(out, ref, atol=1e-5, rtol=1e-5)

    # NOTE: at this demo size (B=8, d=32, L=3, grid=(1,)) the kernel is pure
    # fixed overhead; the tiling/VMEM logic above only pays off at realistic
    # batch and feature sizes.
    print("KERNEL_OK")
</pallas_src>

<mosaic_0001>
module attributes {stable_mosaic.version = 11 : i64} {
  func.func @kernel(%arg0: i32, %arg1: memref<8x128xf32, #tpu.memory_space<vmem>>, %arg2: memref<128x128xf32, #tpu.memory_space<vmem>>, %arg3: memref<1x128xf32, #tpu.memory_space<vmem>>, %arg4: memref<128x128xf32, #tpu.memory_space<vmem>>, %arg5: memref<1x128xf32, #tpu.memory_space<vmem>>, %arg6: memref<128x128xf32, #tpu.memory_space<vmem>>, %arg7: memref<1x128xf32, #tpu.memory_space<vmem>>, %arg8: memref<8x128xf32, #tpu.memory_space<vmem>>) attributes {dimension_semantics = [#tpu.dimension_semantics<parallel>], iteration_bounds = array<i64: 1>, scalar_prefetch = 0 : i64, scratch_operands = 0 : i64, tpu.core_type = #tpu.core_type<tc>, window_params = [{transform_indices = @transform_0, window_bounds = array<i64: 8, 128>}, {pipeline_mode = #tpu.pipeline_mode<synchronous>, transform_indices = @transform_1, window_bounds = array<i64: 128, 128>}, {pipeline_mode = #tpu.pipeline_mode<synchronous>, transform_indices = @transform_2, window_bounds = array<i64: 1, 128>}, {pipeline_mode = #tpu.pipeline_mode<synchronous>, transform_indices = @transform_3, window_bounds = array<i64: 128, 128>}, {pipeline_mode = #tpu.pipeline_mode<synchronous>, transform_indices = @transform_4, window_bounds = array<i64: 1, 128>}, {pipeline_mode = #tpu.pipeline_mode<synchronous>, transform_indices = @transform_5, window_bounds = array<i64: 128, 128>}, {pipeline_mode = #tpu.pipeline_mode<synchronous>, transform_indices = @transform_6, window_bounds = array<i64: 1, 128>}, {transform_indices = @transform_7, window_bounds = array<i64: 8, 128>}]} {
    %c0 = arith.constant 0 : index
    %c0_0 = arith.constant 0 : index
    %0 = vector.load %arg1[%c0, %c0_0] : memref<8x128xf32, #tpu.memory_space<vmem>>, vector<8x128xf32>
    %c0_1 = arith.constant 0 : index
    %c0_2 = arith.constant 0 : index
    %1 = vector.load %arg2[%c0_1, %c0_2] : memref<128x128xf32, #tpu.memory_space<vmem>>, vector<128x128xf32>
    %c0_3 = arith.constant 0 : index
    %c0_4 = arith.constant 0 : index
    %2 = vector.load %arg3[%c0_3, %c0_4] : memref<1x128xf32, #tpu.memory_space<vmem>>, vector<1x128xf32>
    %cst = arith.constant dense<0.000000e+00> : vector<8x128xf32>
    %3 = tpu.matmul %0, %1, %cst {dimension_numbers = #tpu.dot_dimension_numbers<[1], [0], [0], [1], [0, 0, 1, 1], [], []>} : vector<8x128xf32>, vector<128x128xf32>, vector<8x128xf32> -> vector<8x128xf32>
    %4 = vector.broadcast %2 : vector<1x128xf32> to vector<8x128xf32>
    %5 = arith.addf %3, %4 : vector<8x128xf32>
    %c0_5 = arith.constant 0 : index
    %c0_6 = arith.constant 0 : index
    %6 = vector.load %arg4[%c0_5, %c0_6] : memref<128x128xf32, #tpu.memory_space<vmem>>, vector<128x128xf32>
    %c0_7 = arith.constant 0 : index
    %c0_8 = arith.constant 0 : index
    %7 = vector.load %arg5[%c0_7, %c0_8] : memref<1x128xf32, #tpu.memory_space<vmem>>, vector<1x128xf32>
    %cst_9 = arith.constant dense<0.000000e+00> : vector<8x128xf32>
    %8 = tpu.matmul %5, %6, %cst_9 {dimension_numbers = #tpu.dot_dimension_numbers<[1], [0], [0], [1], [0, 0, 1, 1], [], []>} : vector<8x128xf32>, vector<128x128xf32>, vector<8x128xf32> -> vector<8x128xf32>
    %9 = vector.broadcast %7 : vector<1x128xf32> to vector<8x128xf32>
    %10 = arith.addf %8, %9 : vector<8x128xf32>
    %c0_10 = arith.constant 0 : index
    %c0_11 = arith.constant 0 : index
    %11 = vector.load %arg6[%c0_10, %c0_11] : memref<128x128xf32, #tpu.memory_space<vmem>>, vector<128x128xf32>
    %c0_12 = arith.constant 0 : index
    %c0_13 = arith.constant 0 : index
    %12 = vector.load %arg7[%c0_12, %c0_13] : memref<1x128xf32, #tpu.memory_space<vmem>>, vector<1x128xf32>
    %cst_14 = arith.constant dense<0.000000e+00> : vector<8x128xf32>
    %13 = tpu.matmul %10, %11, %cst_14 {dimension_numbers = #tpu.dot_dimension_numbers<[1], [0], [0], [1], [0, 0, 1, 1], [], []>} : vector<8x128xf32>, vector<128x128xf32>, vector<8x128xf32> -> vector<8x128xf32>
    %14 = vector.broadcast %12 : vector<1x128xf32> to vector<8x128xf32>
    %15 = arith.addf %13, %14 : vector<8x128xf32>
    %c0_15 = arith.constant 0 : index
    %c0_16 = arith.constant 0 : index
    %16 = vector.load %arg8[%c0_15, %c0_16] : memref<8x128xf32, #tpu.memory_space<vmem>>, vector<8x128xf32>
    tpu.vector_store %arg8[%c0_15, %c0_16], %15 {strides = array<i32>} : memref<8x128xf32, #tpu.memory_space<vmem>>, vector<8x128xf32>,
    return
  }
  func.func @transform_0(%arg0: i32) -> (i32, i32) {
    %c0_i32 = arith.constant 0 : i32
    %c0_i32_0 = arith.constant 0 : i32
    return %arg0, %c0_i32 : i32, i32
  }
  func.func @transform_1(%arg0: i32) -> (i32, i32) {
    %c0_i32 = arith.constant 0 : i32
    %c0_i32_0 = arith.constant 0 : i32
    %c0_i32_1 = arith.constant 0 : i32
    return %c0_i32, %c0_i32_0 : i32, i32
  }
  func.func @transform_2(%arg0: i32) -> (i32, i32) {
    %c0_i32 = arith.constant 0 : i32
    %c0_i32_0 = arith.constant 0 : i32
    %c0_i32_1 = arith.constant 0 : i32
    return %c0_i32, %c0_i32_0 : i32, i32
  }
  func.func @transform_3(%arg0: i32) -> (i32, i32) {
    %c0_i32 = arith.constant 0 : i32
    %c0_i32_0 = arith.constant 0 : i32
    %c0_i32_1 = arith.constant 0 : i32
    return %c0_i32, %c0_i32_0 : i32, i32
  }
  func.func @transform_4(%arg0: i32) -> (i32, i32) {
    %c0_i32 = arith.constant 0 : i32
    %c0_i32_0 = arith.constant 0 : i32
    %c0_i32_1 = arith.constant 0 : i32
    return %c0_i32, %c0_i32_0 : i32, i32
  }
  func.func @transform_5(%arg0: i32) -> (i32, i32) {
    %c0_i32 = arith.constant 0 : i32
    %c0_i32_0 = arith.constant 0 : i32
    %c0_i32_1 = arith.constant 0 : i32
    return %c0_i32, %c0_i32_0 : i32, i32
  }
  func.func @transform_6(%arg0: i32) -> (i32, i32) {
    %c0_i32 = arith.constant 0 : i32
    %c0_i32_0 = arith.constant 0 : i32
    %c0_i32_1 = arith.constant 0 : i32
    return %c0_i32, %c0_i32_0 : i32, i32
  }
  func.func @transform_7(%arg0: i32) -> (i32, i32) {
    %c0_i32 = arith.constant 0 : i32
    %c0_i32_0 = arith.constant 0 : i32
    return %arg0, %c0_i32 : i32, i32
  }
}

module attributes {stable_mosaic.version = 11 : i64} {
  func.func @kernel(%arg0: i32, %arg1: memref<8x128xf32, #tpu.memory_space<vmem>>, %arg2: memref<128x128xf32, #tpu.memory_space<vmem>>, %arg3: memref<1x128xf32, #tpu.memory_space<vmem>>, %arg4: memref<128x128xf32, #tpu.memory_space<vmem>>, %arg5: memref<1x128xf32, #tpu.memory_space<vmem>>, %arg6: memref<128x128xf32, #tpu.memory_space<vmem>>, %arg7: memref<1x128xf32, #tpu.memory_space<vmem>>, %arg8: memref<8x128xf32, #tpu.memory_space<vmem>>) attributes {dimension_semantics = [#tpu.dimension_semantics<parallel>], iteration_bounds = array<i64: 1>, scalar_prefetch = 0 : i64, scratch_operands = 0 : i64, tpu.core_type = #tpu.core_type<tc>, window_params = [{transform_indices = @transform_0, window_bounds = array<i64: 8, 128>}, {pipeline_mode = #tpu.pipeline_mode<synchronous>, transform_indices = @transform_1, window_bounds = array<i64: 128, 128>}, {pipeline_mode = #tpu.pipeline_mode<synchronous>, transform_indices = @transform_2, window_bounds = array<i64: 1, 128>}, {pipeline_mode = #tpu.pipeline_mode<synchronous>, transform_indices = @transform_3, window_bounds = array<i64: 128, 128>}, {pipeline_mode = #tpu.pipeline_mode<synchronous>, transform_indices = @transform_4, window_bounds = array<i64: 1, 128>}, {pipeline_mode = #tpu.pipeline_mode<synchronous>, transform_indices = @transform_5, window_bounds = array<i64: 128, 128>}, {pipeline_mode = #tpu.pipeline_mode<synchronous>, transform_indices = @transform_6, window_bounds = array<i64: 1, 128>}, {transform_indices = @transform_7, window_bounds = array<i64: 8, 128>}]} {
    %c0 = arith.constant 0 : index
    %c0_0 = arith.constant 0 : index
    %0 = vector.load %arg1[%c0, %c0_0] : memref<8x128xf32, #tpu.memory_space<vmem>>, vector<8x128xf32>
    %c0_1 = arith.constant 0 : index
    %c0_2 = arith.constant 0 : index
    %1 = vector.load %arg2[%c0_1, %c0_2] : memref<128x128xf32, #tpu.memory_space<vmem>>, vector<128x128xf32>
    %c0_3 = arith.constant 0 : index
    %c0_4 = arith.constant 0 : index
    %2 = vector.load %arg3[%c0_3, %c0_4] : memref<1x128xf32, #tpu.memory_space<vmem>>, vector<1x128xf32>
    %cst = arith.constant dense<0.000000e+00> : vector<8x128xf32>
    %3 = tpu.matmul %0, %1, %cst {dimension_numbers = #tpu.dot_dimension_numbers<[1], [0], [0], [1], [0, 0, 1, 1], [], []>} : vector<8x128xf32>, vector<128x128xf32>, vector<8x128xf32> -> vector<8x128xf32>
    %4 = vector.broadcast %2 : vector<1x128xf32> to vector<8x128xf32>
    %5 = arith.addf %3, %4 : vector<8x128xf32>
    %c0_5 = arith.constant 0 : index
    %c0_6 = arith.constant 0 : index
    %6 = vector.load %arg4[%c0_5, %c0_6] : memref<128x128xf32, #tpu.memory_space<vmem>>, vector<128x128xf32>
    %c0_7 = arith.constant 0 : index
    %c0_8 = arith.constant 0 : index
    %7 = vector.load %arg5[%c0_7, %c0_8] : memref<1x128xf32, #tpu.memory_space<vmem>>, vector<1x128xf32>
    %cst_9 = arith.constant dense<0.000000e+00> : vector<8x128xf32>
    %8 = tpu.matmul %5, %6, %cst_9 {dimension_numbers = #tpu.dot_dimension_numbers<[1], [0], [0], [1], [0, 0, 1, 1], [], []>} : vector<8x128xf32>, vector<128x128xf32>, vector<8x128xf32> -> vector<8x128xf32>
    %9 = vector.broadcast %7 : vector<1x128xf32> to vector<8x128xf32>
    %10 = arith.addf %8, %9 : vector<8x128xf32>
    %c0_10 = arith.constant 0 : index
    %c0_11 = arith.constant 0 : index
    %11 = vector.load %arg6[%c0_10, %c0_11] : memref<128x128xf32, #tpu.memory_space<vmem>>, vector<128x128xf32>
    %c0_12 = arith.constant 0 : index
    %c0_13 = arith.constant 0 : index
    %12 = vector.load %arg7[%c0_12, %c0_13] : memref<1x128xf32, #tpu.memory_space<vmem>>, vector<1x128xf32>
    %cst_14 = arith.constant dense<0.000000e+00> : vector<8x128xf32>
    %13 = tpu.matmul %10, %11, %cst_14 {dimension_numbers = #tpu.dot_dimension_numbers<[1], [0], [0], [1], [0, 0, 1, 1], [], []>} : vector<8x128xf32>, vector<128x128xf32>, vector<8x128xf32> -> vector<8x128xf32>
    %14 = vector.broadcast %12 : vector<1x128xf32> to vector<8x128xf32>
    %15 = arith.addf %13, %14 : vector<8x128xf32>
    %c0_15 = arith.constant 0 : index
    %c0_16 = arith.constant 0 : index
    %16 = vector.load %arg8[%c0_15, %c0_16] : memref<8x128xf32, #tpu.memory_space<vmem>>, vector<8x128xf32>
    tpu.vector_store %arg8[%c0_15, %c0_16], %15 {strides = array<i32>} : memref<8x128xf32, #tpu.memory_space<vmem>>, vector<8x128xf32>,
    return
  }
  func.func @transform_0(%arg0: i32) -> (i32, i32) {
    %c0_i32 = arith.constant 0 : i32
    %c0_i32_0 = arith.constant 0 : i32
    return %arg0, %c0_i32 : i32, i32
  }
  func.func @transform_1(%arg0: i32) -> (i32, i32) {
    %c0_i32 = arith.constant 0 : i32
    %c0_i32_0 = arith.constant 0 : i32
    %c0_i32_1 = arith.constant 0 : i32
    return %c0_i32, %c0_i32_0 : i32, i32
  }
  func.func @transform_2(%arg0: i32) -> (i32, i32) {
    %c0_i32 = arith.constant 0 : i32
    %c0_i32_0 = arith.constant 0 : i32
    %c0_i32_1 = arith.constant 0 : i32
    return %c0_i32, %c0_i32_0 : i32, i32
  }
  func.func @transform_3(%arg0: i32) -> (i32, i32) {
    %c0_i32 = arith.constant 0 : i32
    %c0_i32_0 = arith.constant 0 : i32
    %c0_i32_1 = arith.constant 0 : i32
    return %c0_i32, %c0_i32_0 : i32, i32
  }
  func.func @transform_4(%arg0: i32) -> (i32, i32) {
    %c0_i32 = arith.constant 0 : i32
    %c0_i32_0 = arith.constant 0 : i32
    %c0_i32_1 = arith.constant 0 : i32
    return %c0_i32, %c0_i32_0 : i32, i32
  }
  func.func @transform_5(%arg0: i32) -> (i32, i32) {
    %c0_i32 = arith.constant 0 : i32
    %c0_i32_0 = arith.constant 0 : i32
    %c0_i32_1 = arith.constant 0 : i32
    return %c0_i32, %c0_i32_0 : i32, i32
  }
  func.func @transform_6(%arg0: i32) -> (i32, i32) {
    %c0_i32 = arith.constant 0 : i32
    %c0_i32_0 = arith.constant 0 : i32
    %c0_i32_1 = arith.constant 0 : i32
    return %c0_i32, %c0_i32_0 : i32, i32
  }
  func.func @transform_7(%arg0: i32) -> (i32, i32) {
    %c0_i32 = arith.constant 0 : i32
    %c0_i32_0 = arith.constant 0 : i32
    return %arg0, %c0_i32 : i32, i32
  }
}

</mosaic_0001>

<llo_original>
// kernel: _forward.1
$region0: #{_forward.1}
  #allocation0 [shape = 'u32[]', space=smem, size = 0x4, offset = 0x4, fixed_abs, tag = 'smem constant byte address 0x4 - core index']
  #allocation1 [shape = 'u32[144,128]{1,0:T(1,128)}', space=vmem, size = 0x12000, scoped, tag = 'internal scratch']
  %s0 = inlined_call_operand.vmem [shape: f32[8,128], index: 0, kind: input, shape index: {}]
  %s1 = inlined_call_operand.hbm [shape: f32[128,128], index: 1, kind: input, shape index: {}]
  %s2 = inlined_call_operand.vmem [shape: f32[1,128], index: 2, kind: input, shape index: {}]
  %s3 = inlined_call_operand.hbm [shape: f32[128,128], index: 3, kind: input, shape index: {}]
  %s4 = inlined_call_operand.vmem [shape: f32[1,128], index: 4, kind: input, shape index: {}]
  %s5 = inlined_call_operand.hbm [shape: f32[128,128], index: 5, kind: input, shape index: {}]
  %s6 = inlined_call_operand.vmem [shape: f32[1,128], index: 6, kind: input, shape index: {}]
  %s7 = inlined_call_operand.hbm [shape: f32[8,128], index: 7, kind: output, shape index: {}]
  %s8 = sld [smem:[#allocation0]]
  $region50: #{_forward.1} parent=0
    _
  %s10 = ssub.s32 1, %s8
  %s11 = scalar_select 0, %s10, %s8
  $region1: #{_forward.1} parent=0
    #allocation2 [shape = 'u8[65536]{0}', space=vmem, size = 0x10000, scoped, tag = 'input window, operand 1, single buffered']
    #allocation3 [shape = 's32[1]{0}', space=sflag, size = 0x4, scoped, tag = 'scoped memory for _forward.1']
    #allocation4 [shape = 's32[1]{0}', space=sflag, size = 0x4, scoped, tag = 'scoped memory for _forward.1']
    #allocation5 [shape = 'u8[65536]{0}', space=vmem, size = 0x10000, scoped, tag = 'input window, operand 3, single buffered']
    #allocation6 [shape = 's32[1]{0}', space=sflag, size = 0x4, scoped, tag = 'scoped memory for _forward.1']
    #allocation7 [shape = 'u8[65536]{0}', space=vmem, size = 0x10000, scoped, tag = 'input window, operand 5, single buffered']
    #allocation8 [shape = 'u8[4096]{0}', space=vmem, size = 0x1000, scoped, tag = 'output window, operand 0, single buffered']
    %12 = vsyncpa [#allocation3], 0
    %13 = vsyncpa [#allocation6], 0
    %14 = vsyncpa [#allocation4], 0
    // Predicated region
    $region2: #{_forward.1} parent=1 // pred_check
      _
    $region3: #{_forward.1} parent=1 // pred_check_branch
      %16 = sbr.rel (0) target = $region5
    $region4: #{_forward.1} parent=1 // pred_region
      _
    $region5: #{_forward.1} parent=1 // pred_fallthru
      _
    // Predicated region
    $region6: #{_forward.1} parent=1 // pred_check
      _
    $region7: #{_forward.1} parent=1 // pred_check_branch
      %18 = sbr.rel (0) target = $region9
    $region8: #{_forward.1} parent=1 // pred_region
      %s20 = ssub.s32 2048, 2048
      %21 = vsyncadd [#allocation3], %s20
      %s22 = sshll.u32 [#allocation2], 4
      %s23 = int_to_ptr.vmem [resolvable:$true] %s22
      %28 = dma.hbm_to_vmem [thread:$0]  %s1, 2048, %s23, [#allocation3], 128, 128, 8
    $region9: #{_forward.1} parent=1 // pred_fallthru
      _
    // Predicated region
    $region10: #{_forward.1} parent=1 // pred_check
      _
    $region11: #{_forward.1} parent=1 // pred_check_branch
      %30 = sbr.rel (0) target = $region13
    $region12: #{_forward.1} parent=1 // pred_region
      _
    $region13: #{_forward.1} parent=1 // pred_fallthru
      _
    // Predicated region
    $region14: #{_forward.1} parent=1 // pred_check
      _
    $region15: #{_forward.1} parent=1 // pred_check_branch
      %32 = sbr.rel (0) target = $region17
    $region16: #{_forward.1} parent=1 // pred_region
      %s34 = ssub.s32 2048, 2048
      %35 = vsyncadd [#allocation6], %s34
      %s36 = sshll.u32 [#allocation5], 4
      %s37 = int_to_ptr.vmem [resolvable:$true] %s36
      %42 = dma.hbm_to_vmem [thread:$0]  %s3, 2048, %s37, [#allocation6], 128, 128, 8
    $region17: #{_forward.1} parent=1 // pred_fallthru
      _
    // Predicated region
    $region18: #{_forward.1} parent=1 // pred_check
      _
    $region19: #{_forward.1} parent=1 // pred_check_branch
      %44 = sbr.rel (0) target = $region21
    $region20: #{_forward.1} parent=1 // pred_region
      _
    $region21: #{_forward.1} parent=1 // pred_fallthru
      _
    // Predicated region
    $region22: #{_forward.1} parent=1 // pred_check
      _
    $region23: #{_forward.1} parent=1 // pred_check_branch
      %46 = sbr.rel (0) target = $region25
    $region24: #{_forward.1} parent=1 // pred_region
      %s48 = ssub.s32 2048, 2048
      %49 = vsyncadd [#allocation6], %s48
      %s50 = sshll.u32 [#allocation7], 4
      %s51 = int_to_ptr.vmem [resolvable:$true] %s50
      %56 = dma.hbm_to_vmem [thread:$0]  %s5, 2048, %s51, [#allocation6], 128, 128, 8
    $region25: #{_forward.1} parent=1 // pred_fallthru
      _
    // Predicated region
    $region26: #{_forward.1} parent=1 // pred_check
      _
    $region27: #{_forward.1} parent=1 // pred_check_branch
      %58 = sbr.rel (0) target = $region29
    $region28: #{_forward.1} parent=1 // pred_region
      _
    $region29: #{_forward.1} parent=1 // pred_fallthru
      _
    // Predicated region
    $region30: #{_forward.1} parent=1 // pred_check
      _
    $region31: #{_forward.1} parent=1 // pred_check_branch
      %60 = sbr.rel (0) target = $region33
    $region32: #{_forward.1} parent=1 // pred_region
      %61 = dma.done [#allocation3], 2048
    $region33: #{_forward.1} parent=1 // pred_fallthru
      _
    // Predicated region
    $region34: #{_forward.1} parent=1 // pred_check
      _
    $region35: #{_forward.1} parent=1 // pred_check_branch
      %63 = sbr.rel (0) target = $region37
    $region36: #{_forward.1} parent=1 // pred_region
      %64 = dma.done [#allocation6], 2048
    $region37: #{_forward.1} parent=1 // pred_fallthru
      _
    // Predicated region
    $region38: #{_forward.1} parent=1 // pred_check
      _
    $region39: #{_forward.1} parent=1 // pred_check_branch
      %66 = sbr.rel (0) target = $region41
    $region40: #{_forward.1} parent=1 // pred_region
      %67 = dma.done [#allocation6], 2048
    $region41: #{_forward.1} parent=1 // pred_fallthru
      _
    %v68 = vld [vmem:[%s0] sm:$0xff]
    %v69 = vld [vmem:[#allocation2] sm:$0xff]
    %v70 = vld [vmem:[#allocation2 + $0x8] sm:$0xff]
    %v71 = vld [vmem:[#allocation2 + $0x10] sm:$0xff]
    %v72 = vld [vmem:[#allocation2 + $0x18] sm:$0xff]
    %v73 = vld [vmem:[#allocation2 + $0x20] sm:$0xff]
    %v74 = vld [vmem:[#allocation2 + $0x28] sm:$0xff]
    %v75 = vld [vmem:[#allocation2 + $0x30] sm:$0xff]
    %v76 = vld [vmem:[#allocation2 + $0x38] sm:$0xff]
    %v77 = vld [vmem:[#allocation2 + $0x40] sm:$0xff]
    %v78 = vld [vmem:[#allocation2 + $0x48] sm:$0xff]
    %v79 = vld [vmem:[#allocation2 + $0x50] sm:$0xff]
    %v80 = vld [vmem:[#allocation2 + $0x58] sm:$0xff]
    %v81 = vld [vmem:[#allocation2 + $0x60] sm:$0xff]
    %v82 = vld [vmem:[#allocation2 + $0x68] sm:$0xff]
    %v83 = vld [vmem:[#allocation2 + $0x70] sm:$0xff]
    %v84 = vld [vmem:[#allocation2 + $0x78] sm:$0xff]
    %v85 = vld [vmem:[%s2] sm:$0x1]
    %v87 = vlaneseq
    %v88 = vshrl.u32 %v87, 7
    %v89 = vsub.s32 0, %v88
    %v90 = vrot.slane %v85, %v89
    %92 = vmatprep.subr.mxu0 0.0
    %93 = vmatpush1.msra.mxu0 %v84
    %94 = vmatprep.subr.mxu0 0.0
    %95 = vmatpush1.msra.mxu0 %v83
    %96 = vmatprep.subr.mxu0 0.0
    %97 = vmatpush1.msra.mxu0 %v82
    %98 = vmatprep.subr.mxu0 0.0
    %99 = vmatpush1.msra.mxu0 %v81
    %100 = vmatprep.subr.mxu0 0.0
    %101 = vmatpush1.msra.mxu0 %v80
    %102 = vmatprep.subr.mxu0 0.0
    %103 = vmatpush1.msra.mxu0 %v79
    %104 = vmatprep.subr.mxu0 0.0
    %105 = vmatpush1.msra.mxu0 %v78
    %106 = vmatprep.subr.mxu0 0.0
    %107 = vmatpush1.msra.mxu0 %v77
    %108 = vmatprep.subr.mxu0 0.0
    %109 = vmatpush1.msra.mxu0 %v76
    %110 = vmatprep.subr.mxu0 0.0
    %111 = vmatpush1.msra.mxu0 %v75
    %112 = vmatprep.subr.mxu0 0.0
    %113 = vmatpush1.msra.mxu0 %v74
    %114 = vmatprep.subr.mxu0 0.0
    %115 = vmatpush1.msra.mxu0 %v73
    %116 = vmatprep.subr.mxu0 0.0
    %117 = vmatpush1.msra.mxu0 %v72
    %118 = vmatprep.subr.mxu0 0.0
    %119 = vmatpush1.msra.mxu0 %v71
    %120 = vmatprep.subr.mxu0 0.0
    %121 = vmatpush1.msra.mxu0 %v70
    %122 = vmatprep.subr.mxu0 0.0
    %123 = vmatpush1.msra.mxu0 %v69
    %124 = vmatprep.subr.mxu0 0.0
    %125 = vmatpush2.msra.mxu0 0.0
    %126 = vmatprep.subr.mxu0 0.0
    %127 = vmatpush2.msra.mxu0 0.0
    %128 = vmatprep.subr.mxu0 0.0
    %129 = vmatpush2.msra.mxu0 0.0
    %130 = vmatprep.subr.mxu0 0.0
    %131 = vmatpush2.msra.mxu0 0.0
    %132 = vmatprep.subr.mxu0 0.0
    %133 = vmatpush2.msra.mxu0 0.0
    %134 = vmatprep.subr.mxu0 0.0
    %135 = vmatpush2.msra.mxu0 0.0
    %136 = vmatprep.subr.mxu0 0.0
    %137 = vmatpush2.msra.mxu0 0.0
    %138 = vmatprep.subr.mxu0 0.0
    %139 = vmatpush2.msra.mxu0 0.0
    %140 = vmatprep.subr.mxu0 0.0
    %141 = vmatpush2.msra.mxu0 0.0
    %142 = vmatprep.subr.mxu0 0.0
    %143 = vmatpush2.msra.mxu0 0.0
    %144 = vmatprep.subr.mxu0 0.0
    %145 = vmatpush2.msra.mxu0 0.0
    %146 = vmatprep.subr.mxu0 0.0
    %147 = vmatpush2.msra.mxu0 0.0
    %148 = vmatprep.subr.mxu0 0.0
    %149 = vmatpush2.msra.mxu0 0.0
    %150 = vmatprep.subr.mxu0 0.0
    %151 = vmatpush2.msra.mxu0 0.0
    %152 = vmatprep.subr.mxu0 0.0
    %153 = vmatpush2.msra.mxu0 0.0
    %154 = vmatprep.subr.mxu0 0.0
    %155 = vmatpush2.msra.mxu0 0.0
    %156 = vmatprep.mubr.f32.mxu0 0.0
    %157 = vmatmul.mubr.f32.gmra.mxu0 %v68
    %v158 = vpop.f32.mrf.mxu0
    %v159 = vadd.f32 %v90, %v158
    %v160 = vpop.f32.mrf.mxu0
    %161 = vdwg.mxu0
    %v162 = vld [vmem:[#allocation5] sm:$0xff]
    %v163 = vld [vmem:[#allocation5 + $0x8] sm:$0xff]
    %v164 = vld [vmem:[#allocation5 + $0x10] sm:$0xff]
    %v165 = vld [vmem:[#allocation5 + $0x18] sm:$0xff]
    %v166 = vld [vmem:[#allocation5 + $0x20] sm:$0xff]
    %v167 = vld [vmem:[#allocation5 + $0x28] sm:$0xff]
    %v168 = vld [vmem:[#allocation5 + $0x30] sm:$0xff]
    %v169 = vld [vmem:[#allocation5 + $0x38] sm:$0xff]
    %v170 = vld [vmem:[#allocation5 + $0x40] sm:$0xff]
    %v171 = vld [vmem:[#allocation5 + $0x48] sm:$0xff]
    %v172 = vld [vmem:[#allocation5 + $0x50] sm:$0xff]
    %v173 = vld [vmem:[#allocation5 + $0x58] sm:$0xff]
    %v174 = vld [vmem:[#allocation5 + $0x60] sm:$0xff]
    %v175 = vld [vmem:[#allocation5 + $0x68] sm:$0xff]
    %v176 = vld [vmem:[#allocation5 + $0x70] sm:$0xff]
    %v177 = vld [vmem:[#allocation5 + $0x78] sm:$0xff]
    %v178 = vld [vmem:[%s4] sm:$0x1]
    %v180 = vlaneseq
    %v181 = vshrl.u32 %v180, 7
    %v182 = vsub.s32 0, %v181
    %v183 = vrot.slane %v178, %v182
    %185 = vmatprep.subr.mxu0 0.0
    %186 = vmatpush1.msra.mxu0 %v177
    %187 = vmatprep.subr.mxu0 0.0
    %188 = vmatpush1.msra.mxu0 %v176
    %189 = vmatprep.subr.mxu0 0.0
    %190 = vmatpush1.msra.mxu0 %v175
    %191 = vmatprep.subr.mxu0 0.0
    %192 = vmatpush1.msra.mxu0 %v174
    %193 = vmatprep.subr.mxu0 0.0
    %194 = vmatpush1.msra.mxu0 %v173
    %195 = vmatprep.subr.mxu0 0.0
    %196 = vmatpush1.msra.mxu0 %v172
    %197 = vmatprep.subr.mxu0 0.0
    %198 = vmatpush1.msra.mxu0 %v171
    %199 = vmatprep.subr.mxu0 0.0
    %200 = vmatpush1.msra.mxu0 %v170
    %201 = vmatprep.subr.mxu0 0.0
    %202 = vmatpush1.msra.mxu0 %v169
    %203 = vmatprep.subr.mxu0 0.0
    %204 = vmatpush1.msra.mxu0 %v168
    %205 = vmatprep.subr.mxu0 0.0
    %206 = vmatpush1.msra.mxu0 %v167
    %207 = vmatprep.subr.mxu0 0.0
    %208 = vmatpush1.msra.mxu0 %v166
    %209 = vmatprep.subr.mxu0 0.0
    %210 = vmatpush1.msra.mxu0 %v165
    %211 = vmatprep.subr.mxu0 0.0
    %212 = vmatpush1.msra.mxu0 %v164
    %213 = vmatprep.subr.mxu0 0.0
    %214 = vmatpush1.msra.mxu0 %v163
    %215 = vmatprep.subr.mxu0 0.0
    %216 = vmatpush1.msra.mxu0 %v162
    %217 = vmatprep.subr.mxu0 0.0
    %218 = vmatpush2.msra.mxu0 0.0
    %219 = vmatprep.subr.mxu0 0.0
    %220 = vmatpush2.msra.mxu0 0.0
    %221 = vmatprep.subr.mxu0 0.0
    %222 = vmatpush2.msra.mxu0 0.0
    %223 = vmatprep.subr.mxu0 0.0
    %224 = vmatpush2.msra.mxu0 0.0
    %225 = vmatprep.subr.mxu0 0.0
    %226 = vmatpush2.msra.mxu0 0.0
    %227 = vmatprep.subr.mxu0 0.0
    %228 = vmatpush2.msra.mxu0 0.0
    %229 = vmatprep.subr.mxu0 0.0
    %230 = vmatpush2.msra.mxu0 0.0
    %231 = vmatprep.subr.mxu0 0.0
    %232 = vmatpush2.msra.mxu0 0.0
    %233 = vmatprep.subr.mxu0 0.0
    %234 = vmatpush2.msra.mxu0 0.0
    %235 = vmatprep.subr.mxu0 0.0
    %236 = vmatpush2.msra.mxu0 0.0
    %237 = vmatprep.subr.mxu0 0.0
    %238 = vmatpush2.msra.mxu0 0.0
    %239 = vmatprep.subr.mxu0 0.0
    %240 = vmatpush2.msra.mxu0 0.0
    %241 = vmatprep.subr.mxu0 0.0
    %242 = vmatpush2.msra.mxu0 0.0
    %243 = vmatprep.subr.mxu0 0.0
    %244 = vmatpush2.msra.mxu0 0.0
    %245 = vmatprep.subr.mxu0 0.0
    %246 = vmatpush2.msra.mxu0 0.0
    %247 = vmatprep.subr.mxu0 0.0
    %248 = vmatpush2.msra.mxu0 0.0
    %249 = vmatprep.mubr.f32.mxu0 0.0
    %250 = vmatmul.mubr.f32.gmra.mxu0 %v159
    %v251 = vpop.f32.mrf.mxu0
    %v252 = vadd.f32 %v183, %v251
    %v253 = vpop.f32.mrf.mxu0
    %254 = vdwg.mxu0
    %v255 = vld [vmem:[#allocation7] sm:$0xff]
    %v256 = vld [vmem:[#allocation7 + $0x8] sm:$0xff]
    %v257 = vld [vmem:[#allocation7 + $0x10] sm:$0xff]
    %v258 = vld [vmem:[#allocation7 + $0x18] sm:$0xff]
    %v259 = vld [vmem:[#allocation7 + $0x20] sm:$0xff]
    %v260 = vld [vmem:[#allocation7 + $0x28] sm:$0xff]
    %v261 = vld [vmem:[#allocation7 + $0x30] sm:$0xff]
    %v262 = vld [vmem:[#allocation7 + $0x38] sm:$0xff]
    %v263 = vld [vmem:[#allocation7 + $0x40] sm:$0xff]
    %v264 = vld [vmem:[#allocation7 + $0x48] sm:$0xff]
    %v265 = vld [vmem:[#allocation7 + $0x50] sm:$0xff]
    %v266 = vld [vmem:[#allocation7 + $0x58] sm:$0xff]
    %v267 = vld [vmem:[#allocation7 + $0x60] sm:$0xff]
    %v268 = vld [vmem:[#allocation7 + $0x68] sm:$0xff]
    %v269 = vld [vmem:[#allocation7 + $0x70] sm:$0xff]
    %v270 = vld [vmem:[#allocation7 + $0x78] sm:$0xff]
    %v271 = vld [vmem:[%s6] sm:$0x1]
    %v273 = vlaneseq
    %v274 = vshrl.u32 %v273, 7
    %v275 = vsub.s32 0, %v274
    %v276 = vrot.slane %v271, %v275
    %278 = vmatprep.subr.mxu0 0.0
    %279 = vmatpush1.msra.mxu0 %v270
    %280 = vmatprep.subr.mxu0 0.0
    %281 = vmatpush1.msra.mxu0 %v269
    %282 = vmatprep.subr.mxu0 0.0
    %283 = vmatpush1.msra.mxu0 %v268
    %284 = vmatprep.subr.mxu0 0.0
    %285 = vmatpush1.msra.mxu0 %v267
    %286 = vmatprep.subr.mxu0 0.0
    %287 = vmatpush1.msra.mxu0 %v266
    %288 = vmatprep.subr.mxu0 0.0
    %289 = vmatpush1.msra.mxu0 %v265
    %290 = vmatprep.subr.mxu0 0.0
    %291 = vmatpush1.msra.mxu0 %v264
    %292 = vmatprep.subr.mxu0 0.0
    %293 = vmatpush1.msra.mxu0 %v263
    %294 = vmatprep.subr.mxu0 0.0
    %295 = vmatpush1.msra.mxu0 %v262
    %296 = vmatprep.subr.mxu0 0.0
    %297 = vmatpush1.msra.mxu0 %v261
    %298 = vmatprep.subr.mxu0 0.0
    %299 = vmatpush1.msra.mxu0 %v260
    %300 = vmatprep.subr.mxu0 0.0
    %301 = vmatpush1.msra.mxu0 %v259
    %302 = vmatprep.subr.mxu0 0.0
    %303 = vmatpush1.msra.mxu0 %v258
    %304 = vmatprep.subr.mxu0 0.0
    %305 = vmatpush1.msra.mxu0 %v257
    %306 = vmatprep.subr.mxu0 0.0
    %307 = vmatpush1.msra.mxu0 %v256
    %308 = vmatprep.subr.mxu0 0.0
    %309 = vmatpush1.msra.mxu0 %v255
    %310 = vmatprep.subr.mxu0 0.0
    %311 = vmatpush2.msra.mxu0 0.0
    %312 = vmatprep.subr.mxu0 0.0
    %313 = vmatpush2.msra.mxu0 0.0
    %314 = vmatprep.subr.mxu0 0.0
    %315 = vmatpush2.msra.mxu0 0.0
    %316 = vmatprep.subr.mxu0 0.0
    %317 = vmatpush2.msra.mxu0 0.0
    %318 = vmatprep.subr.mxu0 0.0
    %319 = vmatpush2.msra.mxu0 0.0
    %320 = vmatprep.subr.mxu0 0.0
    %321 = vmatpush2.msra.mxu0 0.0
    %322 = vmatprep.subr.mxu0 0.0
    %323 = vmatpush2.msra.mxu0 0.0
    %324 = vmatprep.subr.mxu0 0.0
    %325 = vmatpush2.msra.mxu0 0.0
    %326 = vmatprep.subr.mxu0 0.0
    %327 = vmatpush2.msra.mxu0 0.0
    %328 = vmatprep.subr.mxu0 0.0
    %329 = vmatpush2.msra.mxu0 0.0
    %330 = vmatprep.subr.mxu0 0.0
    %331 = vmatpush2.msra.mxu0 0.0
    %332 = vmatprep.subr.mxu0 0.0
    %333 = vmatpush2.msra.mxu0 0.0
    %334 = vmatprep.subr.mxu0 0.0
    %335 = vmatpush2.msra.mxu0 0.0
    %336 = vmatprep.subr.mxu0 0.0
    %337 = vmatpush2.msra.mxu0 0.0
    %338 = vmatprep.subr.mxu0 0.0
    %339 = vmatpush2.msra.mxu0 0.0
    %340 = vmatprep.subr.mxu0 0.0
    %341 = vmatpush2.msra.mxu0 0.0
    %342 = vmatprep.mubr.f32.mxu0 0.0
    %343 = vmatmul.mubr.f32.gmra.mxu0 %v252
    %v344 = vpop.f32.mrf.mxu0
    %v345 = vadd.f32 %v276, %v344
    %v346 = vpop.f32.mrf.mxu0
    %347 = vdwg.mxu0
    %348 = vst [vmem:[#allocation8] sm:$0xff] %v345
    // Predicated region
    $region42: #{_forward.1} parent=1 // pred_check
      _
    $region43: #{_forward.1} parent=1 // pred_check_branch
      %350 = sbr.rel (0) target = $region45
    $region44: #{_forward.1} parent=1 // pred_region
      %s352 = ssub.s32 128, 128
      %353 = vsyncadd [#allocation4], %s352
      %s355 = sshll.u32 [#allocation8], 4
      %s356 = int_to_ptr.vmem [resolvable:$true] %s355
      %358 = dma.vmem_to_hbm [thread:$0]  %s356, 128, %s7, [#allocation4]
    $region45: #{_forward.1} parent=1 // pred_fallthru
      _
    // Predicated region
    $region46: #{_forward.1} parent=1 // pred_check
      _
    $region47: #{_forward.1} parent=1 // pred_check_branch
      %360 = sbr.rel (0) target = $region49
    $region48: #{_forward.1} parent=1 // pred_region
      %361 = dma.done [#allocation4], 128
    $region49: #{_forward.1} parent=1 // pred_fallthru
      _
    %362 = vsyncpa [#allocation3], 1
    %363 = vsyncpa [#allocation6], 1
    %364 = vsyncpa [#allocation4], 1

// kernel: _forward.1
$region0: #{_forward.1}
  #allocation0 [shape = 'u32[]', space=smem, size = 0x4, offset = 0x4, fixed_abs, tag = 'smem constant byte address 0x4 - core index']
  #allocation1 [shape = 'u32[144,128]{1,0:T(1,128)}', space=vmem, size = 0x12000, scoped, tag = 'internal scratch']
  %s0 = inlined_call_operand.vmem [shape: f32[8,128], index: 0, kind: input, shape index: {}]
  %s1 = inlined_call_operand.hbm [shape: f32[128,128], index: 1, kind: input, shape index: {}]
  %s2 = inlined_call_operand.vmem [shape: f32[1,128], index: 2, kind: input, shape index: {}]
  %s3 = inlined_call_operand.hbm [shape: f32[128,128], index: 3, kind: input, shape index: {}]
  %s4 = inlined_call_operand.vmem [shape: f32[1,128], index: 4, kind: input, shape index: {}]
  %s5 = inlined_call_operand.hbm [shape: f32[128,128], index: 5, kind: input, shape index: {}]
  %s6 = inlined_call_operand.vmem [shape: f32[1,128], index: 6, kind: input, shape index: {}]
  %s7 = inlined_call_operand.hbm [shape: f32[8,128], index: 7, kind: output, shape index: {}]
  %s8 = sld [smem:[#allocation0]]
  $region50: #{_forward.1} parent=0
    _
  %s10 = ssub.s32 1, %s8
  %s11 = scalar_select 0, %s10, %s8
  $region1: #{_forward.1} parent=0
    #allocation2 [shape = 'u8[65536]{0}', space=vmem, size = 0x10000, scoped, tag = 'input window, operand 1, single buffered']
    #allocation3 [shape = 's32[1]{0}', space=sflag, size = 0x4, scoped, tag = 'scoped memory for _forward.1']
    #allocation4 [shape = 's32[1]{0}', space=sflag, size = 0x4, scoped, tag = 'scoped memory for _forward.1']
    #allocation5 [shape = 'u8[65536]{0}', space=vmem, size = 0x10000, scoped, tag = 'input window, operand 3, single buffered']
    #allocation6 [shape = 's32[1]{0}', space=sflag, size = 0x4, scoped, tag = 'scoped memory for _forward.1']
    #allocation7 [shape = 'u8[65536]{0}', space=vmem, size = 0x10000, scoped, tag = 'input window, operand 5, single buffered']
    #allocation8 [shape = 'u8[4096]{0}', space=vmem, size = 0x1000, scoped, tag = 'output window, operand 0, single buffered']
    %12 = vsyncpa [#allocation3], 0
    %13 = vsyncpa [#allocation6], 0
    %14 = vsyncpa [#allocation4], 0
    // Predicated region
    $region2: #{_forward.1} parent=1 // pred_check
      _
    $region3: #{_forward.1} parent=1 // pred_check_branch
      %16 = sbr.rel (0) target = $region5
    $region4: #{_forward.1} parent=1 // pred_region
      _
    $region5: #{_forward.1} parent=1 // pred_fallthru
      _
    // Predicated region
    $region6: #{_forward.1} parent=1 // pred_check
      _
    $region7: #{_forward.1} parent=1 // pred_check_branch
      %18 = sbr.rel (0) target = $region9
    $region8: #{_forward.1} parent=1 // pred_region
      %s20 = ssub.s32 2048, 2048
      %21 = vsyncadd [#allocation3], %s20
      %s22 = sshll.u32 [#allocation2], 4
      %s23 = int_to_ptr.vmem [resolvable:$true] %s22
      %28 = dma.hbm_to_vmem [thread:$0]  %s1, 2048, %s23, [#allocation3], 128, 128, 8
    $region9: #{_forward.1} parent=1 // pred_fallthru
      _
    // Predicated region
    $region10: #{_forward.1} parent=1 // pred_check
      _
    $region11: #{_forward.1} parent=1 // pred_check_branch
      %30 = sbr.rel (0) target = $region13
    $region12: #{_forward.1} parent=1 // pred_region
      _
    $region13: #{_forward.1} parent=1 // pred_fallthru
      _
    // Predicated region
    $region14: #{_forward.1} parent=1 // pred_check
      _
    $region15: #{_forward.1} parent=1 // pred_check_branch
      %32 = sbr.rel (0) target = $region17
    $region16: #{_forward.1} parent=1 // pred_region
      %s34 = ssub.s32 2048, 2048
      %35 = vsyncadd [#allocation6], %s34
      %s36 = sshll.u32 [#allocation5], 4
      %s37 = int_to_ptr.vmem [resolvable:$true] %s36
      %42 = dma.hbm_to_vmem [thread:$0]  %s3, 2048, %s37, [#allocation6], 128, 128, 8
    $region17: #{_forward.1} parent=1 // pred_fallthru
      _
    // Predicated region
    $region18: #{_forward.1} parent=1 // pred_check
      _
    $region19: #{_forward.1} parent=1 // pred_check_branch
      %44 = sbr.rel (0) target = $region21
    $region20: #{_forward.1} parent=1 // pred_region
      _
    $region21: #{_forward.1} parent=1 // pred_fallthru
      _
    // Predicated region
    $region22: #{_forward.1} parent=1 // pred_check
      _
    $region23: #{_forward.1} parent=1 // pred_check_branch
      %46 = sbr.rel (0) target = $region25
    $region24: #{_forward.1} parent=1 // pred_region
      %s48 = ssub.s32 2048, 2048
      %49 = vsyncadd [#allocation6], %s48
      %s50 = sshll.u32 [#allocation7], 4
      %s51 = int_to_ptr.vmem [resolvable:$true] %s50
      %56 = dma.hbm_to_vmem [thread:$0]  %s5, 2048, %s51, [#allocation6], 128, 128, 8
    $region25: #{_forward.1} parent=1 // pred_fallthru
      _
    // Predicated region
    $region26: #{_forward.1} parent=1 // pred_check
      _
    $region27: #{_forward.1} parent=1 // pred_check_branch
      %58 = sbr.rel (0) target = $region29
    $region28: #{_forward.1} parent=1 // pred_region
      _
    $region29: #{_forward.1} parent=1 // pred_fallthru
      _
    // Predicated region
    $region30: #{_forward.1} parent=1 // pred_check
      _
    $region31: #{_forward.1} parent=1 // pred_check_branch
      %60 = sbr.rel (0) target = $region33
    $region32: #{_forward.1} parent=1 // pred_region
      %61 = dma.done [#allocation3], 2048
    $region33: #{_forward.1} parent=1 // pred_fallthru
      _
    // Predicated region
    $region34: #{_forward.1} parent=1 // pred_check
      _
    $region35: #{_forward.1} parent=1 // pred_check_branch
      %63 = sbr.rel (0) target = $region37
    $region36: #{_forward.1} parent=1 // pred_region
      %64 = dma.done [#allocation6], 2048
    $region37: #{_forward.1} parent=1 // pred_fallthru
      _
    // Predicated region
    $region38: #{_forward.1} parent=1 // pred_check
      _
    $region39: #{_forward.1} parent=1 // pred_check_branch
      %66 = sbr.rel (0) target = $region41
    $region40: #{_forward.1} parent=1 // pred_region
      %67 = dma.done [#allocation6], 2048
    $region41: #{_forward.1} parent=1 // pred_fallthru
      _
    %v68 = vld [vmem:[%s0] sm:$0xff]
    %v69 = vld [vmem:[#allocation2] sm:$0xff]
    %v70 = vld [vmem:[#allocation2 + $0x8] sm:$0xff]
    %v71 = vld [vmem:[#allocation2 + $0x10] sm:$0xff]
    %v72 = vld [vmem:[#allocation2 + $0x18] sm:$0xff]
    %v73 = vld [vmem:[#allocation2 + $0x20] sm:$0xff]
    %v74 = vld [vmem:[#allocation2 + $0x28] sm:$0xff]
    %v75 = vld [vmem:[#allocation2 + $0x30] sm:$0xff]
    %v76 = vld [vmem:[#allocation2 + $0x38] sm:$0xff]
    %v77 = vld [vmem:[#allocation2 + $0x40] sm:$0xff]
    %v78 = vld [vmem:[#allocation2 + $0x48] sm:$0xff]
    %v79 = vld [vmem:[#allocation2 + $0x50] sm:$0xff]
    %v80 = vld [vmem:[#allocation2 + $0x58] sm:$0xff]
    %v81 = vld [vmem:[#allocation2 + $0x60] sm:$0xff]
    %v82 = vld [vmem:[#allocation2 + $0x68] sm:$0xff]
    %v83 = vld [vmem:[#allocation2 + $0x70] sm:$0xff]
    %v84 = vld [vmem:[#allocation2 + $0x78] sm:$0xff]
    %v85 = vld [vmem:[%s2] sm:$0x1]
    %v87 = vlaneseq
    %v88 = vshrl.u32 %v87, 7
    %v89 = vsub.s32 0, %v88
    %v90 = vrot.slane %v85, %v89
    %92 = vmatprep.subr.mxu0 0.0
    %93 = vmatpush1.msra.mxu0 %v84
    %94 = vmatprep.subr.mxu0 0.0
    %95 = vmatpush1.msra.mxu0 %v83
    %96 = vmatprep.subr.mxu0 0.0
    %97 = vmatpush1.msra.mxu0 %v82
    %98 = vmatprep.subr.mxu0 0.0
    %99 = vmatpush1.msra.mxu0 %v81
    %100 = vmatprep.subr.mxu0 0.0
    %101 = vmatpush1.msra.mxu0 %v80
    %102 = vmatprep.subr.mxu0 0.0
    %103 = vmatpush1.msra.mxu0 %v79
    %104 = vmatprep.subr.mxu0 0.0
    %105 = vmatpush1.msra.mxu0 %v78
    %106 = vmatprep.subr.mxu0 0.0
    %107 = vmatpush1.msra.mxu0 %v77
    %108 = vmatprep.subr.mxu0 0.0
    %109 = vmatpush1.msra.mxu0 %v76
    %110 = vmatprep.subr.mxu0 0.0
    %111 = vmatpush1.msra.mxu0 %v75
    %112 = vmatprep.subr.mxu0 0.0
    %113 = vmatpush1.msra.mxu0 %v74
    %114 = vmatprep.subr.mxu0 0.0
    %115 = vmatpush1.msra.mxu0 %v73
    %116 = vmatprep.subr.mxu0 0.0
    %117 = vmatpush1.msra.mxu0 %v72
    %118 = vmatprep.subr.mxu0 0.0
    %119 = vmatpush1.msra.mxu0 %v71
    %120 = vmatprep.subr.mxu0 0.0
    %121 = vmatpush1.msra.mxu0 %v70
    %122 = vmatprep.subr.mxu0 0.0
    %123 = vmatpush1.msra.mxu0 %v69
    %124 = vmatprep.subr.mxu0 0.0
    %125 = vmatpush2.msra.mxu0 0.0
    %126 = vmatprep.subr.mxu0 0.0
    %127 = vmatpush2.msra.mxu0 0.0
    %128 = vmatprep.subr.mxu0 0.0
    %129 = vmatpush2.msra.mxu0 0.0
    %130 = vmatprep.subr.mxu0 0.0
    %131 = vmatpush2.msra.mxu0 0.0
    %132 = vmatprep.subr.mxu0 0.0
    %133 = vmatpush2.msra.mxu0 0.0
    %134 = vmatprep.subr.mxu0 0.0
    %135 = vmatpush2.msra.mxu0 0.0
    %136 = vmatprep.subr.mxu0 0.0
    %137 = vmatpush2.msra.mxu0 0.0
    %138 = vmatprep.subr.mxu0 0.0
    %139 = vmatpush2.msra.mxu0 0.0
    %140 = vmatprep.subr.mxu0 0.0
    %141 = vmatpush2.msra.mxu0 0.0
    %142 = vmatprep.subr.mxu0 0.0
    %143 = vmatpush2.msra.mxu0 0.0
    %144 = vmatprep.subr.mxu0 0.0
    %145 = vmatpush2.msra.mxu0 0.0
    %146 = vmatprep.subr.mxu0 0.0
    %147 = vmatpush2.msra.mxu0 0.0
    %148 = vmatprep.subr.mxu0 0.0
    %149 = vmatpush2.msra.mxu0 0.0
    %150 = vmatprep.subr.mxu0 0.0
    %151 = vmatpush2.msra.mxu0 0.0
    %152 = vmatprep.subr.mxu0 0.0
    %153 = vmatpush2.msra.mxu0 0.0
    %154 = vmatprep.subr.mxu0 0.0
    %155 = vmatpush2.msra.mxu0 0.0
    %156 = vmatprep.mubr.f32.mxu0 0.0
    %157 = vmatmul.mubr.f32.gmra.mxu0 %v68
    %v158 = vpop.f32.mrf.mxu0
    %v159 = vadd.f32 %v90, %v158
    %v160 = vpop.f32.mrf.mxu0
    %161 = vdwg.mxu0
    %v162 = vld [vmem:[#allocation5] sm:$0xff]
    %v163 = vld [vmem:[#allocation5 + $0x8] sm:$0xff]
    %v164 = vld [vmem:[#allocation5 + $0x10] sm:$0xff]
    %v165 = vld [vmem:[#allocation5 + $0x18] sm:$0xff]
    %v166 = vld [vmem:[#allocation5 + $0x20] sm:$0xff]
    %v167 = vld [vmem:[#allocation5 + $0x28] sm:$0xff]
    %v168 = vld [vmem:[#allocation5 + $0x30] sm:$0xff]
    %v169 = vld [vmem:[#allocation5 + $0x38] sm:$0xff]
    %v170 = vld [vmem:[#allocation5 + $0x40] sm:$0xff]
    %v171 = vld [vmem:[#allocation5 + $0x48] sm:$0xff]
    %v172 = vld [vmem:[#allocation5 + $0x50] sm:$0xff]
    %v173 = vld [vmem:[#allocation5 + $0x58] sm:$0xff]
    %v174 = vld [vmem:[#allocation5 + $0x60] sm:$0xff]
    %v175 = vld [vmem:[#allocation5 + $0x68] sm:$0xff]
    %v176 = vld [vmem:[#allocation5 + $0x70] sm:$0xff]
    %v177 = vld [vmem:[#allocation5 + $0x78] sm:$0xff]
    %v178 = vld [vmem:[%s4] sm:$0x1]
    %v180 = vlaneseq
    %v181 = vshrl.u32 %v180, 7
    %v182 = vsub.s32 0, %v181
    %v183 = vrot.slane %v178, %v182
    %185 = vmatprep.subr.mxu0 0.0
    %186 = vmatpush1.msra.mxu0 %v177
    %187 = vmatprep.subr.mxu0 0.0
    %188 = vmatpush1.msra.mxu0 %v176
    %189 = vmatprep.subr.mxu0 0.0
    %190 = vmatpush1.msra.mxu0 %v175
    %191 = vmatprep.subr.mxu0 0.0
    %192 = vmatpush1.msra.mxu0 %v174
    %193 = vmatprep.subr.mxu0 0.0
    %194 = vmatpush1.msra.mxu0 %v173
    %195 = vmatprep.subr.mxu0 0.0
    %196 = vmatpush1.msra.mxu0 %v172
    %197 = vmatprep.subr.mxu0 0.0
    %198 = vmatpush1.msra.mxu0 %v171
    %199 = vmatprep.subr.mxu0 0.0
    %200 = vmatpush1.msra.mxu0 %v170
    %201 = vmatprep.subr.mxu0 0.0
    %202 = vmatpush1.msra.mxu0 %v169
    %203 = vmatprep.subr.mxu0 0.0
    %204 = vmatpush1.msra.mxu0 %v168
    %205 = vmatprep.subr.mxu0 0.0
    %206 = vmatpush1.msra.mxu0 %v167
    %207 = vmatprep.subr.mxu0 0.0
    %208 = vmatpush1.msra.mxu0 %v166
    %209 = vmatprep.subr.mxu0 0.0
    %210 = vmatpush1.msra.mxu0 %v165
    %211 = vmatprep.subr.mxu0 0.0
    %212 = vmatpush1.msra.mxu0 %v164
    %213 = vmatprep.subr.mxu0 0.0
    %214 = vmatpush1.msra.mxu0 %v163
    %215 = vmatprep.subr.mxu0 0.0
    %216 = vmatpush1.msra.mxu0 %v162
    %217 = vmatprep.subr.mxu0 0.0
    %218 = vmatpush2.msra.mxu0 0.0
    %219 = vmatprep.subr.mxu0 0.0
    %220 = vmatpush2.msra.mxu0 0.0
    %221 = vmatprep.subr.mxu0 0.0
    %222 = vmatpush2.msra.mxu0 0.0
    %223 = vmatprep.subr.mxu0 0.0
    %224 = vmatpush2.msra.mxu0 0.0
    %225 = vmatprep.subr.mxu0 0.0
    %226 = vmatpush2.msra.mxu0 0.0
    %227 = vmatprep.subr.mxu0 0.0
    %228 = vmatpush2.msra.mxu0 0.0
    %229 = vmatprep.subr.mxu0 0.0
    %230 = vmatpush2.msra.mxu0 0.0
    %231 = vmatprep.subr.mxu0 0.0
    %232 = vmatpush2.msra.mxu0 0.0
    %233 = vmatprep.subr.mxu0 0.0
    %234 = vmatpush2.msra.mxu0 0.0
    %235 = vmatprep.subr.mxu0 0.0
    %236 = vmatpush2.msra.mxu0 0.0
    %237 = vmatprep.subr.mxu0 0.0
    %238 = vmatpush2.msra.mxu0 0.0
    %239 = vmatprep.subr.mxu0 0.0
    %240 = vmatpush2.msra.mxu0 0.0
    %241 = vmatprep.subr.mxu0 0.0
    %242 = vmatpush2.msra.mxu0 0.0
    %243 = vmatprep.subr.mxu0 0.0
    %244 = vmatpush2.msra.mxu0 0.0
    %245 = vmatprep.subr.mxu0 0.0
    %246 = vmatpush2.msra.mxu0 0.0
    %247 = vmatprep.subr.mxu0 0.0
    %248 = vmatpush2.msra.mxu0 0.0
    %249 = vmatprep.mubr.f32.mxu0 0.0
    %250 = vmatmul.mubr.f32.gmra.mxu0 %v159
    %v251 = vpop.f32.mrf.mxu0
    %v252 = vadd.f32 %v183, %v251
    %v253 = vpop.f32.mrf.mxu0
    %254 = vdwg.mxu0
    %v255 = vld [vmem:[#allocation7] sm:$0xff]
    %v256 = vld [vmem:[#allocation7 + $0x8] sm:$0xff]
    %v257 = vld [vmem:[#allocation7 + $0x10] sm:$0xff]
    %v258 = vld [vmem:[#allocation7 + $0x18] sm:$0xff]
    %v259 = vld [vmem:[#allocation7 + $0x20] sm:$0xff]
    %v260 = vld [vmem:[#allocation7 + $0x28] sm:$0xff]
    %v261 = vld [vmem:[#allocation7 + $0x30] sm:$0xff]
    %v262 = vld [vmem:[#allocation7 + $0x38] sm:$0xff]
    %v263 = vld [vmem:[#allocation7 + $0x40] sm:$0xff]
    %v264 = vld [vmem:[#allocation7 + $0x48] sm:$0xff]
    %v265 = vld [vmem:[#allocation7 + $0x50] sm:$0xff]
    %v266 = vld [vmem:[#allocation7 + $0x58] sm:$0xff]
    %v267 = vld [vmem:[#allocation7 + $0x60] sm:$0xff]
    %v268 = vld [vmem:[#allocation7 + $0x68] sm:$0xff]
    %v269 = vld [vmem:[#allocation7 + $0x70] sm:$0xff]
    %v270 = vld [vmem:[#allocation7 + $0x78] sm:$0xff]
    %v271 = vld [vmem:[%s6] sm:$0x1]
    %v273 = vlaneseq
    %v274 = vshrl.u32 %v273, 7
    %v275 = vsub.s32 0, %v274
    %v276 = vrot.slane %v271, %v275
    %278 = vmatprep.subr.mxu0 0.0
    %279 = vmatpush1.msra.mxu0 %v270
    %280 = vmatprep.subr.mxu0 0.0
    %281 = vmatpush1.msra.mxu0 %v269
    %282 = vmatprep.subr.mxu0 0.0
    %283 = vmatpush1.msra.mxu0 %v268
    %284 = vmatprep.subr.mxu0 0.0
    %285 = vmatpush1.msra.mxu0 %v267
    %286 = vmatprep.subr.mxu0 0.0
    %287 = vmatpush1.msra.mxu0 %v266
    %288 = vmatprep.subr.mxu0 0.0
    %289 = vmatpush1.msra.mxu0 %v265
    %290 = vmatprep.subr.mxu0 0.0
    %291 = vmatpush1.msra.mxu0 %v264
    %292 = vmatprep.subr.mxu0 0.0
    %293 = vmatpush1.msra.mxu0 %v263
    %294 = vmatprep.subr.mxu0 0.0
    %295 = vmatpush1.msra.mxu0 %v262
    %296 = vmatprep.subr.mxu0 0.0
    %297 = vmatpush1.msra.mxu0 %v261
    %298 = vmatprep.subr.mxu0 0.0
    %299 = vmatpush1.msra.mxu0 %v260
    %300 = vmatprep.subr.mxu0 0.0
    %301 = vmatpush1.msra.mxu0 %v259
    %302 = vmatprep.subr.mxu0 0.0
    %303 = vmatpush1.msra.mxu0 %v258
    %304 = vmatprep.subr.mxu0 0.0
    %305 = vmatpush1.msra.mxu0 %v257
    %306 = vmatprep.subr.mxu0 0.0
    %307 = vmatpush1.msra.mxu0 %v256
    %308 = vmatprep.subr.mxu0 0.0
    %309 = vmatpush1.msra.mxu0 %v255
    %310 = vmatprep.subr.mxu0 0.0
    %311 = vmatpush2.msra.mxu0 0.0
    %312 = vmatprep.subr.mxu0 0.0
    %313 = vmatpush2.msra.mxu0 0.0
    %314 = vmatprep.subr.mxu0 0.0
    %315 = vmatpush2.msra.mxu0 0.0
    %316 = vmatprep.subr.mxu0 0.0
    %317 = vmatpush2.msra.mxu0 0.0
    %318 = vmatprep.subr.mxu0 0.0
    %319 = vmatpush2.msra.mxu0 0.0
    %320 = vmatprep.subr.mxu0 0.0
    %321 = vmatpush2.msra.mxu0 0.0
    %322 = vmatprep.subr.mxu0 0.0
    %323 = vmatpush2.msra.mxu0 0.0
    %324 = vmatprep.subr.mxu0 0.0
    %325 = vmatpush2.msra.mxu0 0.0
    %326 = vmatprep.subr.mxu0 0.0
    %327 = vmatpush2.msra.mxu0 0.0
    %328 = vmatprep.subr.mxu0 0.0
    %329 = vmatpush2.msra.mxu0 0.0
    %330 = vmatprep.subr.mxu0 0.0
    %331 = vmatpush2.msra.mxu0 0.0
    %332 = vmatprep.subr.mxu0 0.0
    %333 = vmatpush2.msra.mxu0 0.0
    %334 = vmatprep.subr.mxu0 0.0
    %335 = vmatpush2.msra.mxu0 0.0
    %336 = vmatprep.subr.mxu0 0.0
    %337 = vmatpush2.msra.mxu0 0.0
    %338 = vmatprep.subr.mxu0 0.0
    %339 = vmatpush2.msra.mxu0 0.0
    %340 = vmatprep.subr.mxu0 0.0
    %341 = vmatpush2.msra.mxu0 0.0
    %342 = vmatprep.mubr.f32.mxu0 0.0
    %343 = vmatmul.mubr.f32.gmra.mxu0 %v252
    %v344 = vpop.f32.mrf.mxu0
    %v345 = vadd.f32 %v276, %v344
    %v346 = vpop.f32.mrf.mxu0
    %347 = vdwg.mxu0
    %348 = vst [vmem:[#allocation8] sm:$0xff] %v345
    // Predicated region
    $region42: #{_forward.1} parent=1 // pred_check
      _
    $region43: #{_forward.1} parent=1 // pred_check_branch
      %350 = sbr.rel (0) target = $region45
    $region44: #{_forward.1} parent=1 // pred_region
      %s352 = ssub.s32 128, 128
      %353 = vsyncadd [#allocation4], %s352
      %s355 = sshll.u32 [#allocation8], 4
      %s356 = int_to_ptr.vmem [resolvable:$true] %s355
      %358 = dma.vmem_to_hbm [thread:$0]  %s356, 128, %s7, [#allocation4]
    $region45: #{_forward.1} parent=1 // pred_fallthru
      _
    // Predicated region
    $region46: #{_forward.1} parent=1 // pred_check
      _
    $region47: #{_forward.1} parent=1 // pred_check_branch
      %360 = sbr.rel (0) target = $region49
    $region48: #{_forward.1} parent=1 // pred_region
      %361 = dma.done [#allocation4], 128
    $region49: #{_forward.1} parent=1 // pred_fallthru
      _
    %362 = vsyncpa [#allocation3], 1
    %363 = vsyncpa [#allocation6], 1
    %364 = vsyncpa [#allocation4], 1

</llo_original>
